<compile_context>
chip_gen: v7x
topology: tpu7x:2x2x1
jax: 0.10.0
libtpu: 0.0.40
codegen_flags: <defaults>
</compile_context>

<pallas_src>
import functools

import jax
import jax.numpy as jnp
from jax.experimental import pallas as pl
from jax.experimental.pallas import tpu as pltpu


def _round_up(v, m):
    return ((v + m - 1) // m) * m


def _vmem_capacity_bytes():
    """Physical VMEM per TensorCore; conservative 64 MiB (v7x) fallback."""
    try:
        info = pltpu.get_tpu_info()
        cap = getattr(info, "vmem_capacity_bytes", None)
        if cap:
            return int(cap)
    except Exception:
        pass
    return 64 * 2 ** 20


def _conv_fold_gemm_kernel(x_ref, w_ref, b_ref, o_ref, patch_ref, *, k_h, k_w,
                           row_len, stride, tile_m, win_len, c_in_p, c_out_o,
                           n_m_tiles):
    """Conv2d + bias + ReLU for one (batch, M-tile) grid point.

    x_ref:     (C_in_p, L_ext)             bf16 zero-padded flat input plane
    w_ref:     (C_out_w, KH*KW*C_in_p)     bf16 folded weights
    b_ref:     (C_out_o, 1)                f32 bias
    o_ref:     (C_out_o, tile_m)           output tile, tile_m (>=128) on lanes
    patch_ref: (KH*KW*C_in_p, tile_m) bf16 VMEM scratch for the stacked patch
    """
    if n_m_tiles == 1:
        base = 0
    else:
        # Tile start is always a multiple of 128 (tile_m is).
        base = pl.multiple_of(pl.program_id(1) * (tile_m * stride), 128)

    if stride == 1:
        # One window load per tile; each tap is a static lane-shifted slice.
        win = x_ref[:, pl.ds(base, win_len)]
        for i in range(k_h):
            for j in range(k_w):
                t = i * k_w + j
                off = i * row_len + j
                patch_ref[t * c_in_p:(t + 1) * c_in_p, :] = (
                    win[:, off:off + tile_m])
    else:
        # Strided ref load per tap (avoids KH*KW lane-strided value gathers).
        for i in range(k_h):
            for j in range(k_w):
                t = i * k_w + j
                off = i * row_len + j
                patch_ref[t * c_in_p:(t + 1) * c_in_p, :] = (
                    x_ref[:, pl.ds(base + off, tile_m, stride=stride)])

    # Single MXU matmul, contraction depth KH*KW*C_in_p, f32 accumulation.
    acc = jnp.dot(w_ref[...], patch_ref[...],
                  preferred_element_type=jnp.float32)
    acc = acc[:c_out_o, :] + b_ref[...]         # f32 bias
    o_ref[...] = jnp.maximum(acc, 0.0).astype(o_ref.dtype)


@functools.partial(jax.jit, static_argnames=("stride", "padding"))
def basic_conv2d(x, weight, bias, *, stride=1, padding=0):
    """BasicConv2d forward: Conv2d(stride, padding) + ReLU.  x is NCHW f32."""
    # TODO(synk): nn.Conv2d **kwargs beyond stride/padding (dilation, groups)
    # are not supported by this kernel.
    n, c_in, h, w = x.shape
    c_out, c_in_w, k_h, k_w = weight.shape
    assert c_in_w == c_in
    s = int(stride)
    p = int(padding)

    h_pad, w_pad = h + 2 * p, w + 2 * p
    h_out = (h_pad - k_h) // s + 1
    w_out = (w_pad - k_w) // s + 1

    # bf16 operand channel dims -> multiples of 16 (full packed-vreg sublane
    # tiles); f32 bias / output channel dim -> multiple of 8.  Padded channels
    # are zero and inert.
    c_in_p = _round_up(c_in, 16)
    c_out_w = _round_up(c_out, 16)     # weight sublane axis (bf16)
    c_out_o = _round_up(c_out, 8)      # bias / output rows (f32)
    k_sz = k_h * k_w * c_in_p

    vmem_cap = _vmem_capacity_bytes()
    # Bigger tiles amortize per-grid-step overhead on 128 MiB parts (v5e/v6e);
    # keep the 1024 cap on 64 MiB parts (v7x).
    tile_cap = 2048 if vmem_cap >= 96 * 2 ** 20 else 1024

    # The conv is computed over a flattened output plane with row length w_pad
    # (the padded input width); columns w_out..w_pad-1 of each row are garbage
    # and are sliced off afterwards.  This keeps every tap a contiguous (or
    # stride-s) slice of the flat input and puts the big M dim on lanes.
    m_flat = h_out * w_pad
    tile_m = min(tile_cap, _round_up(m_flat, 128))
    m_flat_p = _round_up(m_flat, tile_m)
    n_m_tiles = m_flat_p // tile_m

    off_max = (k_h - 1) * w_pad + (k_w - 1)
    win_len = _round_up(s * (tile_m - 1) + off_max + 1, 128)
    l_ext = _round_up(max((n_m_tiles - 1) * tile_m * s + win_len,
                          h_pad * w_pad), 128)

    # One fused pad + flatten + cast pass over the input (read from HBM once).
    # TODO(synk): fold this pad/cast into the kernel's input DMA
    # (allow_input_fusion / manual pl.ANY windowed DMA) to drop the extra HBM
    # round-trip of the bf16 copy.
    x_p = jnp.pad(x, ((0, 0), (0, c_in_p - c_in), (p, p), (p, p)))
    x_flat = x_p.reshape(n, c_in_p, h_pad * w_pad)
    x_flat = jnp.pad(x_flat, ((0, 0), (0, 0), (0, l_ext - h_pad * w_pad)))
    x_flat = x_flat.astype(jnp.bfloat16)

    # Weights: (C_out, C_in, KH, KW) -> (C_out_w, KH*KW*C_in_p) bf16, with the
    # folded contraction axis ordered tap-major / channel-minor to match the
    # stacked patch built in-kernel.
    w_p = jnp.pad(weight,
                  ((0, c_out_w - c_out), (0, c_in_p - c_in), (0, 0), (0, 0)))
    w_pck = w_p.transpose(0, 2, 3, 1).reshape(c_out_w, k_sz)
    w_pck = w_pck.astype(jnp.bfloat16)

    b_pck = jnp.pad(bias, (0, c_out_o - c_out)).astype(jnp.float32)
    b_pck = b_pck.reshape(c_out_o, 1)

    kernel = functools.partial(
        _conv_fold_gemm_kernel, k_h=k_h, k_w=k_w, row_len=w_pad, stride=s,
        tile_m=tile_m, win_len=win_len, c_in_p=c_in_p, c_out_o=c_out_o,
        n_m_tiles=n_m_tiles)

    flops = 2 * n * c_out * h_out * w_out * c_in * k_h * k_w
    bytes_accessed = (x_flat.size * 2 + w_pck.size * 2 + b_pck.size * 4
                      + n * c_out_o * m_flat_p * 4)

    k_lanes = _round_up(k_sz, 128)
    vmem_need = (2 * c_in_p * l_ext * 2            # input plane, dbl-buffered
                 + 2 * c_out_w * k_lanes * 2       # weights
                 + 2 * c_out_o * 128 * 4           # bias (lane padded)
                 + 2 * c_out_o * tile_m * 4        # output block
                 + k_sz * tile_m * 2               # patch scratch
                 + c_out_w * tile_m * 4            # matmul result staging
                 + c_in_p * win_len * 2)           # window value
    # Leave ~25% headroom below physical VMEM (matters on v7x's 64 MiB/TC).
    vmem_limit = int(min(max(32 * 2 ** 20, 2 * vmem_need),
                         (vmem_cap * 3) // 4))

    # Batch-parallel / M-arbitrary when n >= 2 so two cores don't each re-DMA
    # the same full input plane; with a single batch let the M axis shard.
    if n >= 2:
        dim_sem = ("parallel", "arbitrary")
    else:
        dim_sem = ("arbitrary", "parallel")

    out_flat = pl.pallas_call(
        kernel,
        out_shape=jax.ShapeDtypeStruct((n, c_out_o, m_flat_p), x.dtype),
        grid_spec=pltpu.PrefetchScalarGridSpec(
            num_scalar_prefetch=0,
            grid=(n, n_m_tiles),
            in_specs=[
                # Full per-batch flat input plane (re-used across M tiles).
                # TODO(synk): switch to per-M-tile windowed blocks (element
                # offsets) if C_in*H*W ever grows past a few MiB per plane.
                pl.BlockSpec((None, c_in_p, l_ext), lambda b, m: (b, 0, 0)),
                pl.BlockSpec((c_out_w, k_sz), lambda b, m: (0, 0)),
                pl.BlockSpec((c_out_o, 1), lambda b, m: (0, 0)),
            ],
            out_specs=pl.BlockSpec((None, c_out_o, tile_m),
                                   lambda b, m: (b, 0, m)),
            scratch_shapes=[pltpu.VMEM((k_sz, tile_m), jnp.bfloat16)],
        ),
        compiler_params=pltpu.CompilerParams(
            dimension_semantics=dim_sem,
            vmem_limit_bytes=vmem_limit,
        ),
        cost_estimate=pl.CostEstimate(
            flops=flops, transcendentals=0, bytes_accessed=bytes_accessed),
    )(x_flat, w_pck, b_pck)

    # (N, C_out_o, M) -> NCHW with slices + a free reshape (no transpose).
    # TODO(synk): fuse this column trim into the consumer to avoid one output
    # relayout pass.
    out = out_flat[:, :c_out, :m_flat].reshape(n, c_out, h_out, w_pad)
    out = out[:, :, :, :w_out]
    return out


if __name__ == "__main__":
    # Module config: BasicConv2d(in_chnls=4, out_chnls=8, kernel_size=3,
    #                            stride=1, padding=1)
    key = jax.random.PRNGKey(0)
    kx, kw_, kb = jax.random.split(key, 3)

    N, C_in, H, W = 2, 4, 16, 16
    C_out, KH, KW = 8, 3, 3
    stride, padding = 1, 1

    x = jax.random.normal(kx, (N, C_in, H, W), dtype=jnp.float32)
    fan_in = C_in * KH * KW
    bound = 1.0 / (fan_in ** 0.5)
    weight = jax.random.uniform(kw_, (C_out, C_in, KH, KW),
                                minval=-bound, maxval=bound, dtype=jnp.float32)
    bias = jax.random.uniform(kb, (C_out,),
                              minval=-bound, maxval=bound, dtype=jnp.float32)

    out = basic_conv2d(x, weight, bias, stride=stride, padding=padding)
    out = jax.block_until_ready(out)
    assert out.shape == (N, C_out, H, W)

    # Reference 1: same math with operands pre-rounded to bf16 (tight check of
    # the kernel's arithmetic: bf16 operands, f32 accumulation).
    ref_bf = jax.lax.conv_general_dilated(
        x.astype(jnp.bfloat16).astype(jnp.float32),
        weight.astype(jnp.bfloat16).astype(jnp.float32),
        window_strides=(stride, stride),
        padding=((padding, padding), (padding, padding)),
        dimension_numbers=("NCHW", "OIHW", "NCHW"),
        precision=jax.lax.Precision.HIGHEST,
    ) + bias.reshape(1, C_out, 1, 1)
    ref_bf = jnp.maximum(ref_bf, 0.0)
    assert jnp.allclose(out, ref_bf, atol=1e-3, rtol=1e-3), \
        float(jnp.max(jnp.abs(out - ref_bf)))

    # Reference 2: exact f32 module semantics (loose tol for bf16 operands).
    ref = jax.lax.conv_general_dilated(
        x, weight, window_strides=(stride, stride),
        padding=((padding, padding), (padding, padding)),
        dimension_numbers=("NCHW", "OIHW", "NCHW"),
        precision=jax.lax.Precision.HIGHEST,
    ) + bias.reshape(1, C_out, 1, 1)
    ref = jnp.maximum(ref, 0.0)
    assert jnp.allclose(out, ref, atol=1e-1, rtol=1e-1)

    print("KERNEL_OK")
</pallas_src>

<mosaic_0001>
module attributes {stable_mosaic.version = 11 : i64} {
  func.func @_conv_fold_gemm_kernel(%arg0: i32, %arg1: i32, %arg2: memref<1x16x512xbf16, #tpu.memory_space<vmem>>, %arg3: memref<16x144xbf16, #tpu.memory_space<vmem>>, %arg4: memref<8x1xf32, #tpu.memory_space<vmem>>, %arg5: memref<1x8x384xf32, #tpu.memory_space<vmem>>, %arg6: memref<144x384xbf16, #tpu.memory_space<vmem>>) attributes {dimension_semantics = [#tpu.dimension_semantics<parallel>, #tpu.dimension_semantics<arbitrary>], iteration_bounds = array<i64: 2, 1>, scalar_prefetch = 0 : i64, scratch_operands = 1 : i64, tpu.core_type = #tpu.core_type<tc>, window_params = [{transform_indices = @transform_0, window_bounds = array<i64: 1, 16, 512>}, {pipeline_mode = #tpu.pipeline_mode<synchronous>, transform_indices = @transform_1, window_bounds = array<i64: 16, 144>}, {pipeline_mode = #tpu.pipeline_mode<synchronous>, transform_indices = @transform_2, window_bounds = array<i64: 8, 1>}, {transform_indices = @transform_3, window_bounds = array<i64: 1, 8, 384>}]} {
    %c0 = arith.constant 0 : index
    %c0_0 = arith.constant 0 : index
    %c0_1 = arith.constant 0 : index
    %0 = vector.load %arg2[%c0, %c0_0, %c0_1] : memref<1x16x512xbf16, #tpu.memory_space<vmem>>, vector<1x16x512xbf16>
    %1 = vector.shape_cast %0 : vector<1x16x512xbf16> to vector<16x512xbf16>
    %2 = vector.extract_strided_slice %1 {offsets = [0, 0], sizes = [16, 384], strides = [1, 1]} : vector<16x512xbf16> to vector<16x384xbf16>
    %c0_2 = arith.constant 0 : index
    %c0_3 = arith.constant 0 : index
    %3 = vector.load %arg6[%c0_2, %c0_3] : memref<144x384xbf16, #tpu.memory_space<vmem>>, vector<16x384xbf16>
    tpu.vector_store %arg6[%c0_2, %c0_3], %2 {strides = array<i32>} : memref<144x384xbf16, #tpu.memory_space<vmem>>, vector<16x384xbf16>,
    %4 = vector.extract_strided_slice %1 {offsets = [0, 1], sizes = [16, 384], strides = [1, 1]} : vector<16x512xbf16> to vector<16x384xbf16>
    %c16 = arith.constant 16 : index
    %c0_4 = arith.constant 0 : index
    %5 = vector.load %arg6[%c16, %c0_4] : memref<144x384xbf16, #tpu.memory_space<vmem>>, vector<16x384xbf16>
    tpu.vector_store %arg6[%c16, %c0_4], %4 {strides = array<i32>} : memref<144x384xbf16, #tpu.memory_space<vmem>>, vector<16x384xbf16>,
    %6 = vector.extract_strided_slice %1 {offsets = [0, 2], sizes = [16, 384], strides = [1, 1]} : vector<16x512xbf16> to vector<16x384xbf16>
    %c32 = arith.constant 32 : index
    %c0_5 = arith.constant 0 : index
    %7 = vector.load %arg6[%c32, %c0_5] : memref<144x384xbf16, #tpu.memory_space<vmem>>, vector<16x384xbf16>
    tpu.vector_store %arg6[%c32, %c0_5], %6 {strides = array<i32>} : memref<144x384xbf16, #tpu.memory_space<vmem>>, vector<16x384xbf16>,
    %8 = vector.extract_strided_slice %1 {offsets = [0, 18], sizes = [16, 384], strides = [1, 1]} : vector<16x512xbf16> to vector<16x384xbf16>
    %c48 = arith.constant 48 : index
    %c0_6 = arith.constant 0 : index
    %9 = vector.load %arg6[%c48, %c0_6] : memref<144x384xbf16, #tpu.memory_space<vmem>>, vector<16x384xbf16>
    tpu.vector_store %arg6[%c48, %c0_6], %8 {strides = array<i32>} : memref<144x384xbf16, #tpu.memory_space<vmem>>, vector<16x384xbf16>,
    %10 = vector.extract_strided_slice %1 {offsets = [0, 19], sizes = [16, 384], strides = [1, 1]} : vector<16x512xbf16> to vector<16x384xbf16>
    %c64 = arith.constant 64 : index
    %c0_7 = arith.constant 0 : index
    %11 = vector.load %arg6[%c64, %c0_7] : memref<144x384xbf16, #tpu.memory_space<vmem>>, vector<16x384xbf16>
    tpu.vector_store %arg6[%c64, %c0_7], %10 {strides = array<i32>} : memref<144x384xbf16, #tpu.memory_space<vmem>>, vector<16x384xbf16>,
    %12 = vector.extract_strided_slice %1 {offsets = [0, 20], sizes = [16, 384], strides = [1, 1]} : vector<16x512xbf16> to vector<16x384xbf16>
    %c80 = arith.constant 80 : index
    %c0_8 = arith.constant 0 : index
    %13 = vector.load %arg6[%c80, %c0_8] : memref<144x384xbf16, #tpu.memory_space<vmem>>, vector<16x384xbf16>
    tpu.vector_store %arg6[%c80, %c0_8], %12 {strides = array<i32>} : memref<144x384xbf16, #tpu.memory_space<vmem>>, vector<16x384xbf16>,
    %14 = vector.extract_strided_slice %1 {offsets = [0, 36], sizes = [16, 384], strides = [1, 1]} : vector<16x512xbf16> to vector<16x384xbf16>
    %c96 = arith.constant 96 : index
    %c0_9 = arith.constant 0 : index
    %15 = vector.load %arg6[%c96, %c0_9] : memref<144x384xbf16, #tpu.memory_space<vmem>>, vector<16x384xbf16>
    tpu.vector_store %arg6[%c96, %c0_9], %14 {strides = array<i32>} : memref<144x384xbf16, #tpu.memory_space<vmem>>, vector<16x384xbf16>,
    %16 = vector.extract_strided_slice %1 {offsets = [0, 37], sizes = [16, 384], strides = [1, 1]} : vector<16x512xbf16> to vector<16x384xbf16>
    %c112 = arith.constant 112 : index
    %c0_10 = arith.constant 0 : index
    %17 = vector.load %arg6[%c112, %c0_10] : memref<144x384xbf16, #tpu.memory_space<vmem>>, vector<16x384xbf16>
    tpu.vector_store %arg6[%c112, %c0_10], %16 {strides = array<i32>} : memref<144x384xbf16, #tpu.memory_space<vmem>>, vector<16x384xbf16>,
    %18 = vector.extract_strided_slice %1 {offsets = [0, 38], sizes = [16, 384], strides = [1, 1]} : vector<16x512xbf16> to vector<16x384xbf16>
    %c128 = arith.constant 128 : index
    %c0_11 = arith.constant 0 : index
    %19 = vector.load %arg6[%c128, %c0_11] : memref<144x384xbf16, #tpu.memory_space<vmem>>, vector<16x384xbf16>
    tpu.vector_store %arg6[%c128, %c0_11], %18 {strides = array<i32>} : memref<144x384xbf16, #tpu.memory_space<vmem>>, vector<16x384xbf16>,
    %c0_12 = arith.constant 0 : index
    %c0_13 = arith.constant 0 : index
    %20 = vector.load %arg3[%c0_12, %c0_13] : memref<16x144xbf16, #tpu.memory_space<vmem>>, vector<16x144xbf16>
    %c0_14 = arith.constant 0 : index
    %c0_15 = arith.constant 0 : index
    %21 = vector.load %arg6[%c0_14, %c0_15] : memref<144x384xbf16, #tpu.memory_space<vmem>>, vector<144x384xbf16>
    %cst = arith.constant dense<0.000000e+00> : vector<16x384xf32>
    %22 = tpu.matmul %20, %21, %cst {dimension_numbers = #tpu.dot_dimension_numbers<[1], [0], [0], [1], [0, 0, 1, 1], [], []>} : vector<16x144xbf16>, vector<144x384xbf16>, vector<16x384xf32> -> vector<16x384xf32>
    %23 = vector.extract_strided_slice %22 {offsets = [0, 0], sizes = [8, 384], strides = [1, 1]} : vector<16x384xf32> to vector<8x384xf32>
    %c0_16 = arith.constant 0 : index
    %c0_17 = arith.constant 0 : index
    %24 = vector.load %arg4[%c0_16, %c0_17] : memref<8x1xf32, #tpu.memory_space<vmem>>, vector<8x1xf32>
    %25 = vector.broadcast %24 : vector<8x1xf32> to vector<8x384xf32>
    %26 = arith.addf %23, %25 : vector<8x384xf32>
    %cst_18 = arith.constant 0.000000e+00 : f32
    %27 = vector.broadcast %cst_18 : f32 to vector<8x384xf32>
    %28 = arith.maximumf %26, %27 : vector<8x384xf32>
    %c0_19 = arith.constant 0 : index
    %c0_20 = arith.constant 0 : index
    %c0_21 = arith.constant 0 : index
    %29 = vector.load %arg5[%c0_19, %c0_20, %c0_21] : memref<1x8x384xf32, #tpu.memory_space<vmem>>, vector<1x8x384xf32>
    %30 = vector.shape_cast %29 : vector<1x8x384xf32> to vector<8x384xf32>
    %31 = vector.shape_cast %28 : vector<8x384xf32> to vector<1x8x384xf32>
    tpu.vector_store %arg5[%c0_19, %c0_20, %c0_21], %31 {strides = array<i32>} : memref<1x8x384xf32, #tpu.memory_space<vmem>>, vector<1x8x384xf32>,
    return
  }
  func.func @transform_0(%arg0: i32, %arg1: i32) -> (i32, i32, i32) {
    %c0_i32 = arith.constant 0 : i32
    %c0_i32_0 = arith.constant 0 : i32
    %c0_i32_1 = arith.constant 0 : i32
    return %arg0, %c0_i32, %c0_i32_0 : i32, i32, i32
  }
  func.func @transform_1(%arg0: i32, %arg1: i32) -> (i32, i32) {
    %c0_i32 = arith.constant 0 : i32
    %c0_i32_0 = arith.constant 0 : i32
    %c0_i32_1 = arith.constant 0 : i32
    return %c0_i32, %c0_i32_0 : i32, i32
  }
  func.func @transform_2(%arg0: i32, %arg1: i32) -> (i32, i32) {
    %c0_i32 = arith.constant 0 : i32
    %c0_i32_0 = arith.constant 0 : i32
    %c0_i32_1 = arith.constant 0 : i32
    return %c0_i32, %c0_i32_0 : i32, i32
  }
  func.func @transform_3(%arg0: i32, %arg1: i32) -> (i32, i32, i32) {
    %c0_i32 = arith.constant 0 : i32
    %c0_i32_0 = arith.constant 0 : i32
    return %arg0, %c0_i32, %arg1 : i32, i32, i32
  }
}

</mosaic_0001>

<llo_original>
// kernel: basic_conv2d.1
$region0: #{basic_conv2d.1}
  #allocation0 [shape = 'u32[]', space=smem, size = 0x4, offset = 0x4, fixed_abs, tag = 'smem constant byte address 0x4 - core index']
  #allocation1 [shape = 'u32[144,128]{1,0:T(1,128)}', space=vmem, size = 0x12000, scoped, tag = 'internal scratch']
  #allocation2 [shape = 'bf16[144,384]{1,0:T(16,128)(2,1)}', space=vmem, size = 0x1b000, scoped, tag = 'scratch operand']
  %s0 = inlined_call_operand.vmem [shape: bf16[2,16,512], index: 0, kind: input, shape index: {}]
  %s1 = inlined_call_operand.vmem [shape: bf16[16,144], index: 1, kind: input, shape index: {}]
  %s2 = inlined_call_operand.vmem [shape: f32[8,1], index: 2, kind: input, shape index: {}]
  %s3 = inlined_call_operand.vmem [shape: f32[2,8,384], index: 3, kind: output, shape index: {}]
  %s4 = sld [smem:[#allocation0]]
  $region45: #{basic_conv2d.1} parent=0
    _
  %s6 = ssub.s32 1, %s4
  %s7 = scalar_select 0, %s6, %s4
  loop: start=0, step=1, limit=4
  $region2: #{basic_conv2d.1} parent=0 // loop_pre_header
    _
  $region3: #{basic_conv2d.1} parent=0 // loop_header
    %s9 = sphi 0, %s13
    %p10 = scmp.ge.s32.totalorder %s9, 4
    %s16 = sphi 0, %s28
    %s17 = sphi 0, %s24
    %s18 = sphi 0, %s16
    %s19 = sphi 0, %s17
    %s20 = sphi 0, %s18
    %s21 = sphi 0, %s19
    %s31 = sphi 0, %s33
    %s34 = sphi 0, %s31
    %s35 = sphi 0, %s34
    %s51 = sphi 0, %s35
    %s55 = sphi 0, %s55
    %s57 = sphi 0, %s55
    %s58 = sphi 0, %s57
    %s72 = sphi 0, %s58
    %s76 = sphi 0, %s76
    %s78 = sphi 0, %s76
    %s79 = sphi 0, %s78
    %s93 = sphi 0, %s79
    %s101 = sphi 0, %s103
    %s104 = sphi 0, %s101
    %s105 = sphi 0, %s104
    %s121 = sphi 0, %s105
  $region4: #{basic_conv2d.1} parent=0 // loop_header_branch
    %12 = sbr.rel (%p10) target = $region8
  $region5: #{basic_conv2d.1} parent=0 // loop_body
    %s14 = ssub.s32 %s9, 1
    %s15 = ssub.s32 %s9, 2
    %s22 = sadd.s32 1, %s17
    %p23 = scmp.ge.s32.totalorder %s22, 1
    %s24 = scalar_select %p23, 0, %s22
    %s25 = sadd.s32 1, %s16
    %s26 = scalar_select %p23, %s25, %s16
    %p27 = scmp.ge.s32.totalorder %s26, 2
    %s28 = scalar_select %p27, 0, %s26
    %s29 = ssub.s32 %s16, %s28
    %p30 = scmp.eq.s32.totalorder %s29, 0
    %s32 = sadd.s32 %s31, 1
    %s33 = scalar_select %p30, %s31, %s32
    %p36 = pneg %p30
    %p37 = scmp.eq.s32.totalorder %s9, 1
    %p38 = por %p36, %p37
    %p39 = scmp.ne.s32.totalorder %s31, %s34
    %p40 = scmp.eq.s32.totalorder %s9, 0
    %p41 = por %p39, %p40
    %p42 = scmp.ne.s32.totalorder %s31, %s34
    %p43 = scmp.eq.s32.totalorder %s14, 1
    %p44 = por %p42, %p43
    %p45 = scmp.ne.s32.totalorder %s34, %s35
    %p46 = scmp.eq.s32.totalorder %s14, 0
    %p47 = por %p45, %p46
    %p48 = scmp.ne.s32.totalorder %s34, %s35
    %p49 = scmp.eq.s32.totalorder %s15, 1
    %p50 = por %p48, %p49
    %p52 = scmp.ne.s32.totalorder %s35, %s51
    %p53 = scmp.eq.s32.totalorder %s15, 0
    %p54 = por %p52, %p53
    %s56 = sadd.s32 %s55, 1
    %p59 = scmp.eq.s32.totalorder %s9, 1
    %p60 = scmp.ne.s32.totalorder %s55, %s57
    %p61 = scmp.eq.s32.totalorder %s9, 0
    %p62 = por %p60, %p61
    %p63 = scmp.ne.s32.totalorder %s55, %s57
    %p64 = scmp.eq.s32.totalorder %s14, 1
    %p65 = por %p63, %p64
    %p66 = scmp.ne.s32.totalorder %s57, %s58
    %p67 = scmp.eq.s32.totalorder %s14, 0
    %p68 = por %p66, %p67
    %p69 = scmp.ne.s32.totalorder %s57, %s58
    %p70 = scmp.eq.s32.totalorder %s15, 1
    %p71 = por %p69, %p70
    %p73 = scmp.ne.s32.totalorder %s58, %s72
    %p74 = scmp.eq.s32.totalorder %s15, 0
    %p75 = por %p73, %p74
    %s77 = sadd.s32 %s76, 1
    %p80 = scmp.eq.s32.totalorder %s9, 1
    %p81 = scmp.ne.s32.totalorder %s76, %s78
    %p82 = scmp.eq.s32.totalorder %s9, 0
    %p83 = por %p81, %p82
    %p84 = scmp.ne.s32.totalorder %s76, %s78
    %p85 = scmp.eq.s32.totalorder %s14, 1
    %p86 = por %p84, %p85
    %p87 = scmp.ne.s32.totalorder %s78, %s79
    %p88 = scmp.eq.s32.totalorder %s14, 0
    %p89 = por %p87, %p88
    %p90 = scmp.ne.s32.totalorder %s78, %s79
    %p91 = scmp.eq.s32.totalorder %s15, 1
    %p92 = por %p90, %p91
    %p94 = scmp.ne.s32.totalorder %s79, %s93
    %p95 = scmp.eq.s32.totalorder %s15, 0
    %p96 = por %p94, %p95
    %s97 = ssub.s32 %s16, %s28
    %s98 = ssub.s32 %s17, %s24
    %s99 = sor.u32 %s97, %s98
    %p100 = scmp.eq.s32.totalorder %s99, 0
    %s102 = sadd.s32 %s101, 1
    %s103 = scalar_select %p100, %s101, %s102
    %p106 = pneg %p100
    %p107 = scmp.eq.s32.totalorder %s9, 1
    %p108 = por %p106, %p107
    %p109 = scmp.ne.s32.totalorder %s101, %s104
    %p110 = scmp.eq.s32.totalorder %s9, 0
    %p111 = por %p109, %p110
    %p112 = scmp.ne.s32.totalorder %s101, %s104
    %p113 = scmp.eq.s32.totalorder %s14, 1
    %p114 = por %p112, %p113
    %p115 = scmp.ne.s32.totalorder %s104, %s105
    %p116 = scmp.eq.s32.totalorder %s14, 0
    %p117 = por %p115, %p116
    %p118 = scmp.ne.s32.totalorder %s104, %s105
    %p119 = scmp.eq.s32.totalorder %s15, 1
    %p120 = por %p118, %p119
    %p122 = scmp.ne.s32.totalorder %s105, %s121
    %p123 = scmp.eq.s32.totalorder %s15, 0
    %p124 = por %p122, %p123
    %p125 = scmp.le.s32.totalorder 1, %s9
    %p126 = scmp.lt.s32.totalorder %s9, 3
    %p127 = pnand %p125, %p126
    %p128 = pneg %p127
    // Predicated region
    $region9: #{basic_conv2d.1} parent=5 // pred_check
      _
    $region10: #{basic_conv2d.1} parent=5 // pred_check_branch
      %130 = sbr.rel (%p127) target = $region12
    $region11: #{basic_conv2d.1} parent=5 // pred_region
      %s131 = ssub.s32 %s9, 1
      // Predicated region
      $region13: #{basic_conv2d.1} parent=11 // pred_check
        %p132 = pneg %p68
      $region14: #{basic_conv2d.1} parent=11 // pred_check_branch
        %134 = sbr.rel (%p132) target = $region16
      $region15: #{basic_conv2d.1} parent=11 // pred_region
        _
      $region16: #{basic_conv2d.1} parent=11 // pred_fallthru
        _
      // Predicated region
      $region17: #{basic_conv2d.1} parent=11 // pred_check
        %p135 = pneg %p89
      $region18: #{basic_conv2d.1} parent=11 // pred_check_branch
        %137 = sbr.rel (%p135) target = $region20
      $region19: #{basic_conv2d.1} parent=11 // pred_region
        _
      $region20: #{basic_conv2d.1} parent=11 // pred_fallthru
        _
    $region12: #{basic_conv2d.1} parent=5 // pred_fallthru
      _
    %p138 = scmp.lt.s32.totalorder %s9, 2
    // Predicated region
    $region21: #{basic_conv2d.1} parent=5 // pred_check
      %p139 = pneg %p138
    $region22: #{basic_conv2d.1} parent=5 // pred_check_branch
      %141 = sbr.rel (%p139) target = $region24
    $region23: #{basic_conv2d.1} parent=5 // pred_region
      // Predicated region
      $region25: #{basic_conv2d.1} parent=23 // pred_check
        %p142 = pneg %p41
      $region26: #{basic_conv2d.1} parent=23 // pred_check_branch
        %144 = sbr.rel (%p142) target = $region28
      $region27: #{basic_conv2d.1} parent=23 // pred_region
        %p145 = scmp.lt.s32.totalorder %s16, 1
        %s146 = scalar_select %p145, %s16, 1
        %s147 = smul.addr %s146, 8
        %s148 = smul.addr %s147, 4
        %s149 = scalar_lea.vmem %s0, %s148
      $region28: #{basic_conv2d.1} parent=23 // pred_fallthru
        _
    $region24: #{basic_conv2d.1} parent=5 // pred_fallthru
      _
    %p150 = scmp.le.s32.totalorder 1, %s9
    %p151 = scmp.lt.s32.totalorder %s9, 3
    %p152 = pnand %p150, %p151
    %p153 = pneg %p152
    // Predicated region
    $region29: #{basic_conv2d.1} parent=5 // pred_check
      _
    $region30: #{basic_conv2d.1} parent=5 // pred_check_branch
      %155 = sbr.rel (%p152) target = $region32
    $region31: #{basic_conv2d.1} parent=5 // pred_region
      %s156 = ssub.s32 %s9, 1
      %p157 = scmp.lt.s32.totalorder %s18, 1
      %s158 = scalar_select %p157, %s18, 1
      %s159 = smul.addr %s158, 8
      %s160 = smul.addr %s159, 4
      %s161 = scalar_lea.vmem %s0, %s160
      %p162 = pneg %p47
      %p163 = pneg %p44
      %p164 = pneg %p68
      %p165 = pneg %p65
      %p166 = pneg %p89
      %p167 = pneg %p86
      %p168 = pneg %p117
      %p169 = pneg %p114
      %s170 = smul.u32 3, %s19
      %p171 = scmp.lt.s32.totalorder %s18, 1
      %s172 = scalar_select %p171, %s18, 1
      %p173 = scmp.lt.s32.totalorder %s170, 2
      %s174 = scalar_select %p173, %s170, 2
      %s175 = smul.addr %s172, 3
      %s176 = sadd.s32 %s174, %s175
      %s177 = smul.addr %s176, 8
      %s178 = scalar_lea.vmem %s3, %s177
      %p179 = scmp.lt.s32.totalorder %s18, 1
      %s180 = scalar_select %p179, %s18, 1
      %s181 = smul.addr %s180, 8
      %s182 = smul.addr %s181, 4
      %s183 = scalar_lea.vmem %s0, %s182
      %s184 = smul.u32 3, %s19
      %p185 = scmp.lt.s32.totalorder %s18, 1
      %s186 = scalar_select %p185, %s18, 1
      %p187 = scmp.lt.s32.totalorder %s184, 2
      %s188 = scalar_select %p187, %s184, 2
      %s189 = smul.addr %s186, 3
      %s190 = sadd.s32 %s188, %s189
      %s191 = smul.addr %s190, 8
      %s192 = scalar_lea.vmem %s3, %s191
      %s193 = smul.u32 3, %s19
      %v195 = vld [vmem:[%s183] sm:$0xff]
      %v196 = vld [vmem:[%s183 + $0x8] sm:$0xff]
      %v197 = vld [vmem:[%s183 + $0x10] sm:$0xff]
      %v198 = vld [vmem:[%s183 + $0x18] sm:$0xff]
      %v203 = vunpack.c.l.b16 %v195
      %v204 = vunpack.c.h.b16 %v195
      %v205 = vunpack.c.l.b16 %v196
      %v206 = vunpack.c.l.b16 %v197
      %v207 = vunpack.c.h.b16 %v197
      %v208 = vunpack.c.l.b16 %v198
      %v209 = vpack.c.b16 %v206, %v203
      %v210 = vpack.c.b16 %v207, %v204
      %v211 = vpack.c.b16 %v208, %v205
      %215 = vst [vmem:[#allocation2] sm:$0xff] %v209
      %216 = vst [vmem:[#allocation2 + $0x8] sm:$0xff] %v210
      %217 = vst [vmem:[#allocation2 + $0x10] sm:$0xff] %v211
      %v218 = vunpack.c.h.b16 %v196
      %v219 = vunpack.c.h.b16 %v198
      %v220 = vpack.c.b16 %v219, %v218
      %221 = vrot.lane.b32.xlu0 %v209, 127
      %v222 = vpop.permute.xlu0 %221
      %223 = vrot.lane.b32.xlu0 %v210, 127
      %v224 = vpop.permute.xlu0 %223
      %225 = vrot.lane.b32.xlu0 %v211, 127
      %v226 = vpop.permute.xlu0 %225
      %227 = vrot.lane.b32.xlu0 %v220, 127
      %v228 = vpop.permute.xlu0 %227
      %vm229 = vcmask 1039360
      %v230 = vsel %vm229, %v222, %v224
      %v231 = vsel %vm229, %v224, %v226
      %v232 = vsel %vm229, %v226, %v228
      %236 = vst [vmem:[#allocation2 + $0x18] sm:$0xff] %v230
      %237 = vst [vmem:[#allocation2 + $0x20] sm:$0xff] %v231
      %238 = vst [vmem:[#allocation2 + $0x28] sm:$0xff] %v232
      %239 = vrot.lane.b32.xlu0 %v209, 126
      %v240 = vpop.permute.xlu0 %239
      %241 = vrot.lane.b32.xlu0 %v210, 126
      %v242 = vpop.permute.xlu0 %241
      %243 = vrot.lane.b32.xlu0 %v211, 126
      %v244 = vpop.permute.xlu0 %243
      %245 = vrot.lane.b32.xlu0 %v220, 126
      %v246 = vpop.permute.xlu0 %245
      %vm247 = vcmask 1031168
      %v248 = vsel %vm247, %v240, %v242
      %v249 = vsel %vm247, %v242, %v244
      %v250 = vsel %vm247, %v244, %v246
      %254 = vst [vmem:[#allocation2 + $0x30] sm:$0xff] %v248
      %255 = vst [vmem:[#allocation2 + $0x38] sm:$0xff] %v249
      %256 = vst [vmem:[#allocation2 + $0x40] sm:$0xff] %v250
      %257 = vrot.lane.b32.xlu0 %v209, 110
      %v258 = vpop.permute.xlu0 %257
      %259 = vrot.lane.b32.xlu0 %v210, 110
      %v260 = vpop.permute.xlu0 %259
      %261 = vrot.lane.b32.xlu0 %v211, 110
      %v262 = vpop.permute.xlu0 %261
      %263 = vrot.lane.b32.xlu0 %v220, 110
      %v264 = vpop.permute.xlu0 %263
      %vm265 = vcmask 900096
      %v266 = vsel %vm265, %v258, %v260
      %v267 = vsel %vm265, %v260, %v262
      %v268 = vsel %vm265, %v262, %v264
      %272 = vst [vmem:[#allocation2 + $0x48] sm:$0xff] %v266
      %273 = vst [vmem:[#allocation2 + $0x50] sm:$0xff] %v267
      %274 = vst [vmem:[#allocation2 + $0x58] sm:$0xff] %v268
      %275 = vrot.lane.b32.xlu0 %v209, 109
      %v276 = vpop.permute.xlu0 %275
      %277 = vrot.lane.b32.xlu0 %v210, 109
      %v278 = vpop.permute.xlu0 %277
      %279 = vrot.lane.b32.xlu0 %v211, 109
      %v280 = vpop.permute.xlu0 %279
      %281 = vrot.lane.b32.xlu0 %v220, 109
      %v282 = vpop.permute.xlu0 %281
      %vm283 = vcmask 891904
      %v284 = vsel %vm283, %v276, %v278
      %v285 = vsel %vm283, %v278, %v280
      %v286 = vsel %vm283, %v280, %v282
      %290 = vst [vmem:[#allocation2 + $0x60] sm:$0xff] %v284
      %291 = vst [vmem:[#allocation2 + $0x68] sm:$0xff] %v285
      %292 = vst [vmem:[#allocation2 + $0x70] sm:$0xff] %v286
      %293 = vrot.lane.b32.xlu0 %v209, 108
      %v294 = vpop.permute.xlu0 %293
      %295 = vrot.lane.b32.xlu0 %v210, 108
      %v296 = vpop.permute.xlu0 %295
      %297 = vrot.lane.b32.xlu0 %v211, 108
      %v298 = vpop.permute.xlu0 %297
      %299 = vrot.lane.b32.xlu0 %v220, 108
      %v300 = vpop.permute.xlu0 %299
      %vm301 = vcmask 883712
      %v302 = vsel %vm301, %v294, %v296
      %v303 = vsel %vm301, %v296, %v298
      %v304 = vsel %vm301, %v298, %v300
      %308 = vst [vmem:[#allocation2 + $0x78] sm:$0xff] %v302
      %309 = vst [vmem:[#allocation2 + $0x80] sm:$0xff] %v303
      %310 = vst [vmem:[#allocation2 + $0x88] sm:$0xff] %v304
      %311 = vrot.lane.b32.xlu0 %v209, 92
      %v312 = vpop.permute.xlu0 %311
      %313 = vrot.lane.b32.xlu0 %v210, 92
      %v314 = vpop.permute.xlu0 %313
      %315 = vrot.lane.b32.xlu0 %v211, 92
      %v316 = vpop.permute.xlu0 %315
      %317 = vrot.lane.b32.xlu0 %v220, 92
      %v318 = vpop.permute.xlu0 %317
      %vm319 = vcmask 752640
      %v320 = vsel %vm319, %v312, %v314
      %v321 = vsel %vm319, %v314, %v316
      %v322 = vsel %vm319, %v316, %v318
      %326 = vst [vmem:[#allocation2 + $0x90] sm:$0xff] %v320
      %327 = vst [vmem:[#allocation2 + $0x98] sm:$0xff] %v321
      %328 = vst [vmem:[#allocation2 + $0xa0] sm:$0xff] %v322
      %329 = vrot.lane.b32.xlu0 %v209, 91
      %v330 = vpop.permute.xlu0 %329
      %331 = vrot.lane.b32.xlu0 %v210, 91
      %v332 = vpop.permute.xlu0 %331
      %333 = vrot.lane.b32.xlu0 %v211, 91
      %v334 = vpop.permute.xlu0 %333
      %335 = vrot.lane.b32.xlu0 %v220, 91
      %v336 = vpop.permute.xlu0 %335
      %vm337 = vcmask 744448
      %v338 = vsel %vm337, %v330, %v332
      %v339 = vsel %vm337, %v332, %v334
      %v340 = vsel %vm337, %v334, %v336
      %344 = vst [vmem:[#allocation2 + $0xa8] sm:$0xff] %v338
      %345 = vst [vmem:[#allocation2 + $0xb0] sm:$0xff] %v339
      %346 = vst [vmem:[#allocation2 + $0xb8] sm:$0xff] %v340
      %347 = vrot.lane.b32.xlu0 %v209, 90
      %v348 = vpop.permute.xlu0 %347
      %349 = vrot.lane.b32.xlu0 %v210, 90
      %v350 = vpop.permute.xlu0 %349
      %351 = vrot.lane.b32.xlu0 %v211, 90
      %v352 = vpop.permute.xlu0 %351
      %353 = vrot.lane.b32.xlu0 %v220, 90
      %v354 = vpop.permute.xlu0 %353
      %vm355 = vcmask 736256
      %v356 = vsel %vm355, %v348, %v350
      %v357 = vsel %vm355, %v350, %v352
      %v358 = vsel %vm355, %v352, %v354
      %362 = vst [vmem:[#allocation2 + $0xc0] sm:$0xff] %v356
      %363 = vst [vmem:[#allocation2 + $0xc8] sm:$0xff] %v357
      %364 = vst [vmem:[#allocation2 + $0xd0] sm:$0xff] %v358
      %v365 = vld [vmem:[%s1] sm:$0xff]
      %v366 = vld [vmem:[%s1 + $0x8] sm:$0xff]
      %v367 = vld [vmem:[#allocation2] sm:$0xff]
      %v368 = vld [vmem:[#allocation2 + $0x8] sm:$0xff]
      %v369 = vld [vmem:[#allocation2 + $0x10] sm:$0xff]
      %v370 = vld [vmem:[#allocation2 + $0x18] sm:$0xff]
      %v371 = vld [vmem:[#allocation2 + $0x20] sm:$0xff]
      %v372 = vld [vmem:[#allocation2 + $0x28] sm:$0xff]
      %v373 = vld [vmem:[#allocation2 + $0x30] sm:$0xff]
      %v374 = vld [vmem:[#allocation2 + $0x38] sm:$0xff]
      %v375 = vld [vmem:[#allocation2 + $0x40] sm:$0xff]
      %v376 = vld [vmem:[#allocation2 + $0x48] sm:$0xff]
      %v377 = vld [vmem:[#allocation2 + $0x50] sm:$0xff]
      %v378 = vld [vmem:[#allocation2 + $0x58] sm:$0xff]
      %v379 = vld [vmem:[#allocation2 + $0x60] sm:$0xff]
      %v380 = vld [vmem:[#allocation2 + $0x68] sm:$0xff]
      %v381 = vld [vmem:[#allocation2 + $0x70] sm:$0xff]
      %v382 = vld [vmem:[#allocation2 + $0x78] sm:$0xff]
      %v383 = vld [vmem:[#allocation2 + $0x80] sm:$0xff]
      %v384 = vld [vmem:[#allocation2 + $0x88] sm:$0xff]
      %v385 = vld [vmem:[#allocation2 + $0x90] sm:$0xff]
      %v386 = vld [vmem:[#allocation2 + $0x98] sm:$0xff]
      %v387 = vld [vmem:[#allocation2 + $0xa0] sm:$0xff]
      %v388 = vld [vmem:[#allocation2 + $0xa8] sm:$0xff]
      %v389 = vld [vmem:[#allocation2 + $0xb0] sm:$0xff]
      %v390 = vld [vmem:[#allocation2 + $0xb8] sm:$0xff]
      %v391 = vld [vmem:[#allocation2 + $0xc0] sm:$0xff]
      %v392 = vld [vmem:[#allocation2 + $0xc8] sm:$0xff]
      %v393 = vld [vmem:[#allocation2 + $0xd0] sm:$0xff]
      %v396 = vunpack.c.l.b16 %v365
      %v397 = vunpack.c.h.b16 %v365
      %v398 = vunpack.c.l.b16 %v366
      %v399 = vunpack.c.h.b16 %v366
      %v400 = vpack.c.b16 %v398, %v396
      %v401 = vpack.c.b16 %v399, %v397
      %vm403 = vcmask 130048
      %v405 = vsel %vm403, %v401, 0
      %407 = vmatprep.subr.bf16.mxu0 %v368
      %408 = vmatpush1.bf16.msra.mxu0 %v367
      %409 = vmatprep.subr.bf16.mxu0 %v371
      %410 = vmatpush1.bf16.msra.mxu0 %v370
      %411 = vmatprep.subr.bf16.mxu0 %v374
      %412 = vmatpush1.bf16.msra.mxu0 %v373
      %413 = vmatprep.subr.bf16.mxu0 %v377
      %414 = vmatpush1.bf16.msra.mxu0 %v376
      %415 = vmatprep.subr.bf16.mxu0 %v380
      %416 = vmatpush1.bf16.msra.mxu0 %v379
      %417 = vmatprep.subr.bf16.mxu0 %v383
      %418 = vmatpush1.bf16.msra.mxu0 %v382
      %419 = vmatprep.subr.bf16.mxu0 %v386
      %420 = vmatpush1.bf16.msra.mxu0 %v385
      %421 = vmatprep.subr.bf16.mxu0 %v389
      %422 = vmatpush1.bf16.msra.mxu0 %v388
      %423 = vmatprep.subr.bf16.mxu0 %v392
      %424 = vmatpush1.bf16.msra.mxu0 %v391
      %425 = vmatprep.subr.bf16.mxu0 0
      %426 = vmatpush1.bf16.msra.mxu0 0
      %427 = vmatprep.subr.bf16.mxu0 0
      %428 = vmatpush1.bf16.msra.mxu0 0
      %429 = vmatprep.subr.bf16.mxu0 0
      %430 = vmatpush1.bf16.msra.mxu0 0
      %431 = vmatprep.subr.bf16.mxu0 0
      %432 = vmatpush1.bf16.msra.mxu0 0
      %433 = vmatprep.subr.bf16.mxu0 0
      %434 = vmatpush1.bf16.msra.mxu0 0
      %435 = vmatprep.subr.bf16.mxu0 0
      %436 = vmatpush1.bf16.msra.mxu0 0
      %437 = vmatprep.subr.bf16.mxu0 0
      %438 = vmatpush1.bf16.msra.mxu0 0
      %439 = vmatprep.mubr.bf16.mxu0 %v405
      %440 = vmatmul.mubr.bf16.gmra.mrb[0].mxu0 %v400
      %v441 = vpop.f32.mrb[0].mxu0
      %v442 = vadd.f32 0.0, %v441
      %v443 = vpop.f32.mrb[0].mxu0
      %v444 = vadd.f32 0.0, %v443
      %v445 = vpop.f32.mrb[0].mxu0
      %v446 = vpop.f32.mrb[0].mxu0
      %447 = vdwg.mxu0
      %448 = vmatprep.subr.bf16.mxu0 0
      %449 = vmatpush1.bf16.msra.mxu0 %v369
      %450 = vmatprep.subr.bf16.mxu0 0
      %451 = vmatpush1.bf16.msra.mxu0 %v372
      %452 = vmatprep.subr.bf16.mxu0 0
      %453 = vmatpush1.bf16.msra.mxu0 %v375
      %454 = vmatprep.subr.bf16.mxu0 0
      %455 = vmatpush1.bf16.msra.mxu0 %v378
      %456 = vmatprep.subr.bf16.mxu0 0
      %457 = vmatpush1.bf16.msra.mxu0 %v381
      %458 = vmatprep.subr.bf16.mxu0 0
      %459 = vmatpush1.bf16.msra.mxu0 %v384
      %460 = vmatprep.subr.bf16.mxu0 0
      %461 = vmatpush1.bf16.msra.mxu0 %v387
      %462 = vmatprep.subr.bf16.mxu0 0
      %463 = vmatpush1.bf16.msra.mxu0 %v390
      %464 = vmatprep.subr.bf16.mxu0 0
      %465 = vmatpush1.bf16.msra.mxu0 %v393
      %466 = vmatprep.subr.bf16.mxu0 0
      %467 = vmatpush1.bf16.msra.mxu0 0
      %468 = vmatprep.subr.bf16.mxu0 0
      %469 = vmatpush1.bf16.msra.mxu0 0
      %470 = vmatprep.subr.bf16.mxu0 0
      %471 = vmatpush1.bf16.msra.mxu0 0
      %472 = vmatprep.subr.bf16.mxu0 0
      %473 = vmatpush1.bf16.msra.mxu0 0
      %474 = vmatprep.subr.bf16.mxu0 0
      %475 = vmatpush1.bf16.msra.mxu0 0
      %476 = vmatprep.subr.bf16.mxu0 0
      %477 = vmatpush1.bf16.msra.mxu0 0
      %478 = vmatprep.subr.bf16.mxu0 0
      %479 = vmatpush1.bf16.msra.mxu0 0
      %480 = vmatprep.mubr.bf16.mxu0 %v405
      %481 = vmatmul.mubr.bf16.gmra.mrb[0].mxu0 %v400
      %v482 = vpop.f32.mrb[0].mxu0
      %v483 = vadd.f32 0.0, %v482
      %v484 = vpop.f32.mrb[0].mxu0
      %v485 = vpop.f32.mrb[0].mxu0
      %v486 = vpop.f32.mrb[0].mxu0
      %487 = vdwg.mxu0
      %v488 = vld [vmem:[%s2] sm:$0xff]
      %490 = vset.pattern.permute.xlu0 0
      %491 = vperm.xlu0 %490, %v488
      %v492 = vpop.permute.xlu0 %491
      %v494 = vadd.f32 %v442, %v492
      %v495 = vadd.f32 %v444, %v492
      %v496 = vadd.f32 %v483, %v492
      %v497 = vmax.f32 %v494, 0.0
      %v498 = vmax.f32 %v495, 0.0
      %v499 = vmax.f32 %v496, 0.0
      %500 = vst [vmem:[%s192] sm:$0xff] %v497
      %501 = vst [vmem:[%s192 + $0x8] sm:$0xff] %v498
      %502 = vst [vmem:[%s192 + $0x10] sm:$0xff] %v499
      %s503 = smul.u32 3, %s19
      %p504 = scmp.lt.s32.totalorder %s18, 1
      %s505 = scalar_select %p504, %s18, 1
      %p506 = scmp.lt.s32.totalorder %s503, 2
      %s507 = scalar_select %p506, %s503, 2
      %s508 = smul.addr %s505, 3
      %s509 = sadd.s32 %s507, %s508
      %s510 = smul.addr %s509, 8
      %s511 = scalar_lea.vmem %s3, %s510
      // Predicated region
      $region33: #{basic_conv2d.1} parent=31 // pred_check
        %p512 = pneg %p114
      $region34: #{basic_conv2d.1} parent=31 // pred_check_branch
        %514 = sbr.rel (%p512) target = $region36
      $region35: #{basic_conv2d.1} parent=31 // pred_region
        %s515 = smul.u32 3, %s19
      $region36: #{basic_conv2d.1} parent=31 // pred_fallthru
        _
    $region32: #{basic_conv2d.1} parent=5 // pred_fallthru
      _
    %p516 = scmp.le.s32.totalorder 2, %s9
    // Predicated region
    $region37: #{basic_conv2d.1} parent=5 // pred_check
      %p517 = pneg %p516
    $region38: #{basic_conv2d.1} parent=5 // pred_check_branch
      %519 = sbr.rel (%p517) target = $region40
    $region39: #{basic_conv2d.1} parent=5 // pred_region
      %s520 = ssub.s32 %s9, 2
      // Predicated region
      $region41: #{basic_conv2d.1} parent=39 // pred_check
        %p521 = pneg %p120
      $region42: #{basic_conv2d.1} parent=39 // pred_check_branch
        %523 = sbr.rel (%p521) target = $region44
      $region43: #{basic_conv2d.1} parent=39 // pred_region
        %s524 = smul.u32 3, %s21
        %p525 = scmp.lt.s32.totalorder %s20, 1
        %s526 = scalar_select %p525, %s20, 1
        %p527 = scmp.lt.s32.totalorder %s524, 2
        %s528 = scalar_select %p527, %s524, 2
        %s529 = smul.addr %s526, 3
        %s530 = sadd.s32 %s528, %s529
        %s531 = smul.addr %s530, 8
        %s532 = scalar_lea.vmem %s3, %s531
      $region44: #{basic_conv2d.1} parent=39 // pred_fallthru
        _
    $region40: #{basic_conv2d.1} parent=5 // pred_fallthru
      _
  $region6: #{basic_conv2d.1} parent=0 // loop_footer
    %s13 = sadd.s32 1, %s9
  $region7: #{basic_conv2d.1} parent=0 // loop_footer_branch
    %8 = sbr.rel target = $region3
  $region8: #{basic_conv2d.1} parent=0 // loop_exit
    _

</llo_original>
